<compile_context>
chip_gen: v5e
topology: v5e:2x2
jax: 0.10.0
libtpu: 0.0.40
codegen_flags: <defaults>
</compile_context>

<pallas_src>
import functools
import jax
import jax.numpy as jnp
from jax.experimental import pallas as pl
from jax.experimental.pallas import tpu as pltpu


def _round_up(x, m):
    return ((x + m - 1) // m) * m


# ----------------------------------------------------------------------------
# Plain-JAX glue: sampling / grouping (index shuffles, sorts, gathers)
# ----------------------------------------------------------------------------
def square_distance(src, dst):
    # src: [B, N, C], dst: [B, M, C] -> [B, N, M]
    dist = -2.0 * jnp.einsum("bnc,bmc->bnm", src, dst)
    dist = dist + jnp.sum(src ** 2, -1)[:, :, None]
    dist = dist + jnp.sum(dst ** 2, -1)[:, None, :]
    return dist


def index_points(points, idx):
    # points: [B, N, C]; idx: [B, ...] -> [B, ..., C]
    return jax.vmap(lambda p, i: p[i])(points, idx)


def farthest_point_sample(xyz, npoint):
    # xyz: [B, N, 3] -> [B, npoint] int32
    B, N, _ = xyz.shape

    def body(i, state):
        centroids, distance, farthest = state
        centroids = centroids.at[:, i].set(farthest)
        centroid = jnp.take_along_axis(xyz, farthest[:, None, None], axis=1)  # [B,1,3]
        dist = jnp.sum((xyz - centroid) ** 2, -1)
        distance = jnp.minimum(distance, dist)
        farthest = jnp.argmax(distance, axis=-1).astype(jnp.int32)
        return centroids, distance, farthest

    centroids = jnp.zeros((B, npoint), dtype=jnp.int32)
    distance = jnp.full((B, N), 1e10, dtype=jnp.float32)
    farthest = jnp.zeros((B,), dtype=jnp.int32)
    centroids, _, _ = jax.lax.fori_loop(0, npoint, body, (centroids, distance, farthest))
    return centroids


def query_ball_point(radius, nsample, xyz, new_xyz):
    B, N, _ = xyz.shape
    S = new_xyz.shape[1]
    sqrdists = square_distance(new_xyz, xyz)                         # [B,S,N]
    group_idx = jnp.broadcast_to(jnp.arange(N, dtype=jnp.int32), (B, S, N))
    group_idx = jnp.where(sqrdists > radius ** 2, N, group_idx)
    group_idx = jnp.sort(group_idx, axis=-1)[:, :, :nsample]         # [B,S,nsample]
    group_first = jnp.broadcast_to(group_idx[:, :, :1], group_idx.shape)
    group_idx = jnp.where(group_idx == N, group_first, group_idx)
    return group_idx


def sample_and_group(npoint, radius, nsample, xyz, points):
    B, N, C = xyz.shape
    fps_idx = farthest_point_sample(xyz, npoint)                     # [B,S]
    new_xyz = index_points(xyz, fps_idx)                             # [B,S,3]
    idx = query_ball_point(radius, nsample, xyz, new_xyz)            # [B,S,K]
    grouped_xyz = index_points(xyz, idx)                             # [B,S,K,3]
    grouped_xyz_norm = grouped_xyz - new_xyz[:, :, None, :]
    if points is not None:
        grouped_points = index_points(points, idx)                   # [B,S,K,D]
        new_points = jnp.concatenate([grouped_xyz_norm, grouped_points], axis=-1)
    else:
        new_points = grouped_xyz_norm
    return new_xyz, new_points


def sample_and_group_all(xyz, points):
    B, N, C = xyz.shape
    new_xyz = jnp.zeros((B, 1, C), dtype=xyz.dtype)
    grouped_xyz = xyz[:, None, :, :]
    if points is not None:
        new_points = jnp.concatenate([grouped_xyz, points[:, None, :, :]], axis=-1)
    else:
        new_points = grouped_xyz
    return new_xyz, new_points


# ----------------------------------------------------------------------------
# Pallas kernel: per (batch, S-tile):  [(matmul -> +bias -> ReLU)]*L -> max over K
# x tile layout: (1, TS, K_pad, Cin) bf16;  output tile: (1, TS, Cout_pad) f32
# ----------------------------------------------------------------------------
def _sa_mlp_max_kernel(*refs, n_layers, ts, kc, n_chunks, cin, cout_pad):
    x_ref = refs[0]
    out_ref = refs[-1]
    p_refs = refs[1:-1]          # interleaved (weight, bias) per layer

    acc = None
    for c in range(n_chunks):
        if n_chunks == 1:
            xc = x_ref[0]                                   # (ts, kc, cin) bf16
        else:
            xc = x_ref[0, :, pl.ds(c * kc, kc), :]          # (ts, kc, cin) bf16
        h = xc.reshape(ts * kc, cin)
        for i in range(n_layers):
            w = p_refs[2 * i][...]                          # (cin_i, cout_i) bf16 (BN scale folded)
            b = p_refs[2 * i + 1][...]                      # (1, cout_i)   f32
            h = jnp.dot(h, w, preferred_element_type=jnp.float32)
            h = jnp.maximum(h + b, 0.0)
            if i + 1 < n_layers:
                h = h.astype(jnp.bfloat16)                  # bf16 operands for next MXU pass
        hm = jnp.max(h.reshape(ts, kc, cout_pad), axis=1)   # (ts, cout_pad) running max over K
        acc = hm if acc is None else jnp.maximum(acc, hm)
    out_ref[0] = acc


def sa_mlp_max(x_bskc, weights, biases, *, max_rows=1024, vmem_cap=48 * 1024 * 1024):
    """x_bskc: [B, S, K, Cin] bf16; weights[i]: (cin_i, cout_i) bf16 (BN scale folded,
    last layer zero-padded to a multiple of 128); biases[i]: (cout_i,) f32.
    Returns [B, S_pad, Cout_pad] f32 (caller slices/transposes)."""
    B, S, K, Cin = x_bskc.shape
    n_layers = len(weights)
    cout_pad = weights[-1].shape[1]

    # --- S tile (grid) and K chunk (in-kernel) selection ------------------------------
    ts = S if S <= 8 else min(128, _round_up(min(S, 128), 8))
    s_pad = _round_up(S, ts)
    k8 = _round_up(K, 8)
    kc = max(8, (max_rows // max(ts, 1)) // 8 * 8)
    if kc >= k8:
        kc = k8
    k_pad = _round_up(K, kc)
    n_chunks = k_pad // kc

    if s_pad != S or k_pad != K:
        # Edge replication: duplicate neighbours never change the max; padded S rows are
        # sliced off by the caller.
        x_bskc = jnp.pad(x_bskc, ((0, 0), (0, s_pad - S), (0, k_pad - K), (0, 0)), mode="edge")

    # --- specs -------------------------------------------------------------------------
    in_specs = [pl.BlockSpec((1, ts, k_pad, Cin), lambda b, s: (b, s, 0, 0))]
    args = [x_bskc]
    for w, bvec in zip(weights, biases):
        ci, co = w.shape
        in_specs.append(pl.BlockSpec((ci, co), lambda b, s: (0, 0)))   # resident across grid
        in_specs.append(pl.BlockSpec((1, co), lambda b, s: (0, 0)))
        args += [w, bvec.reshape(1, co)]

    # --- explicit VMEM budget (keeps v7x's 64 MiB physical / 32 MiB scoped happy) -------
    max_c = max(w.shape[1] for w in weights)
    rows = ts * kc
    param_bytes = sum(w.size * 2 + w.shape[1] * 4 for w in weights)
    est = (2 * ts * k_pad * Cin * 2        # x tile, double-buffered, bf16
           + 2 * ts * cout_pad * 4         # out tile, double-buffered, f32
           + 2 * param_bytes               # resident weights/biases
           + 4 * rows * max_c * 4)         # live MLP intermediates (with margin)
    vmem_limit = int(min(vmem_cap, max(2 * est, 16 * 1024 * 1024)))

    kernel = functools.partial(
        _sa_mlp_max_kernel, n_layers=n_layers, ts=ts, kc=kc,
        n_chunks=n_chunks, cin=Cin, cout_pad=cout_pad)

    return pl.pallas_call(
        kernel,
        out_shape=jax.ShapeDtypeStruct((B, s_pad, cout_pad), jnp.float32),
        grid=(B, s_pad // ts),
        in_specs=in_specs,
        out_specs=pl.BlockSpec((1, ts, cout_pad), lambda b, s: (b, s, 0)),
        compiler_params=pltpu.CompilerParams(
            dimension_semantics=("parallel", "parallel"),
            vmem_limit_bytes=vmem_limit),
    )(*args)


# ----------------------------------------------------------------------------
# Full module forward (matches PointNetSetAbstraction.forward)
# ----------------------------------------------------------------------------
def pointnet_set_abstraction(xyz, points, params, *, npoint, radius, nsample, group_all):
    """
    xyz:    [B, 3, N]
    points: [B, D, N] or None
    returns new_xyz [B, 3, S], new_points [B, Cout, S]
    """
    xyz_t = jnp.transpose(xyz, (0, 2, 1))                     # [B, N, 3]
    points_t = None if points is None else jnp.transpose(points, (0, 2, 1))

    if group_all:
        new_xyz, new_points = sample_and_group_all(xyz_t, points_t)
    else:
        new_xyz, new_points = sample_and_group(npoint, radius, nsample, xyz_t, points_t)
    # new_points: [B, S, K, C_in] — consumed directly by the kernel (no transpose).

    # Fold conv-bias + BN(eval) into per-channel scale/bias; fold the scale into the
    # weight columns. Only the last layer's output width is zero-padded to a multiple
    # of 128 (lane-dense unmasked stores); intermediate widths stay native so no MXU
    # work is spent on zero columns. Padded cols/bias are zero -> no value leakage.
    n_layers = len(params)
    weights, biases = [], []
    for li, (w, b_conv, gamma, beta, mean, var, eps) in enumerate(params):
        cout, cin_l = w.shape
        scale = gamma / jnp.sqrt(var + eps)
        bias = (b_conv - mean) * scale + beta
        wt = jnp.transpose(w).astype(jnp.float32) * scale[None, :]    # (cin_l, cout)
        bias = bias.astype(jnp.float32)
        if li == n_layers - 1:
            cout_p = _round_up(cout, 128)
            wt = jnp.pad(wt, ((0, 0), (0, cout_p - cout)))
            bias = jnp.pad(bias, (0, cout_p - cout))
        weights.append(wt.astype(jnp.bfloat16))
        biases.append(bias)

    out = sa_mlp_max(new_points.astype(jnp.bfloat16), weights, biases)  # [B, S_pad, Cout_pad]

    S = new_points.shape[1]
    cout_last = params[-1][0].shape[0]
    new_points_out = jnp.transpose(out[:, :S, :cout_last], (0, 2, 1))   # [B, Cout, S]
    new_xyz_out = jnp.transpose(new_xyz, (0, 2, 1))                     # [B, 3, S]
    return new_xyz_out, new_points_out


# ----------------------------------------------------------------------------
if __name__ == "__main__":
    key = jax.random.PRNGKey(0)

    B, N, C, D = 2, 32, 3, 6
    npoint, radius, nsample = 8, 0.5, 8
    mlp = [16, 32]
    in_channel = C + D  # grouped_xyz_norm (3) concat points (D)
    eps = 1e-5

    keys = jax.random.split(key, 2 + 2 * len(mlp))
    xyz = jax.random.uniform(keys[0], (B, C, N), dtype=jnp.float32)       # [B, 3, N]
    points = jax.random.normal(keys[1], (B, D, N), dtype=jnp.float32)     # [B, D, N]

    # Deterministic parameter init (Conv2d(cin, cout, 1) + BatchNorm2d(cout))
    params = []
    last = in_channel
    for i, cout in enumerate(mlp):
        w = 0.1 * jax.random.normal(keys[2 + 2 * i], (cout, last), dtype=jnp.float32)
        b = 0.05 * jax.random.normal(keys[3 + 2 * i], (cout,), dtype=jnp.float32)
        gamma = jnp.ones((cout,), jnp.float32)
        beta = jnp.zeros((cout,), jnp.float32)
        mean = jnp.zeros((cout,), jnp.float32)
        var = jnp.ones((cout,), jnp.float32)
        params.append((w, b, gamma, beta, mean, var, eps))
        last = cout

    new_xyz, new_points = pointnet_set_abstraction(
        xyz, points, params,
        npoint=npoint, radius=radius, nsample=nsample, group_all=False,
    )
    jax.block_until_ready((new_xyz, new_points))

    # ---------------- reference (plain JAX f32, same eval-BN semantics) ----------------
    xyz_t = jnp.transpose(xyz, (0, 2, 1))
    pts_t = jnp.transpose(points, (0, 2, 1))
    _, grp = sample_and_group(npoint, radius, nsample, xyz_t, pts_t)      # [B,S,K,Cin]
    h = grp
    for (w, b, gamma, beta, mean, var, e) in params:
        scale = gamma / jnp.sqrt(var + e)
        bias = (b - mean) * scale + beta
        h = jnp.maximum(jnp.einsum("bskc,oc->bsko", h, w) * scale + bias, 0.0)
    ref = jnp.transpose(jnp.max(h, axis=2), (0, 2, 1))                    # [B,Cout,S]

    assert new_xyz.shape == (B, C, npoint)
    assert new_points.shape == (B, mlp[-1], npoint)
    # bf16 MXU operands -> looser tolerance vs the f32 reference
    assert jnp.allclose(new_points, ref, atol=5e-2, rtol=5e-2)

    print("KERNEL_OK")
</pallas_src>

<mosaic_0001>
module attributes {stable_mosaic.version = 11 : i64} {
  func.func @_sa_mlp_max_kernel(%arg0: i32, %arg1: i32, %arg2: memref<1x8x8x9xbf16, #tpu.memory_space<vmem>>, %arg3: memref<9x16xbf16, #tpu.memory_space<vmem>>, %arg4: memref<1x16xf32, #tpu.memory_space<vmem>>, %arg5: memref<16x128xbf16, #tpu.memory_space<vmem>>, %arg6: memref<1x128xf32, #tpu.memory_space<vmem>>, %arg7: memref<1x8x128xf32, #tpu.memory_space<vmem>>) attributes {dimension_semantics = [#tpu.dimension_semantics<parallel>, #tpu.dimension_semantics<parallel>], iteration_bounds = array<i64: 2, 1>, scalar_prefetch = 0 : i64, scratch_operands = 0 : i64, tpu.core_type = #tpu.core_type<tc>, window_params = [{transform_indices = @transform_0, window_bounds = array<i64: 1, 8, 8, 9>}, {pipeline_mode = #tpu.pipeline_mode<synchronous>, transform_indices = @transform_1, window_bounds = array<i64: 9, 16>}, {pipeline_mode = #tpu.pipeline_mode<synchronous>, transform_indices = @transform_2, window_bounds = array<i64: 1, 16>}, {pipeline_mode = #tpu.pipeline_mode<synchronous>, transform_indices = @transform_3, window_bounds = array<i64: 16, 128>}, {pipeline_mode = #tpu.pipeline_mode<synchronous>, transform_indices = @transform_4, window_bounds = array<i64: 1, 128>}, {transform_indices = @transform_5, window_bounds = array<i64: 1, 8, 128>}]} {
    %c0 = arith.constant 0 : index
    %c0_0 = arith.constant 0 : index
    %c0_1 = arith.constant 0 : index
    %c0_2 = arith.constant 0 : index
    %0 = vector.load %arg2[%c0, %c0_0, %c0_1, %c0_2] : memref<1x8x8x9xbf16, #tpu.memory_space<vmem>>, vector<1x8x8x9xbf16>
    %1 = vector.shape_cast %0 : vector<1x8x8x9xbf16> to vector<8x8x9xbf16>
    %2 = vector.shape_cast %1 : vector<8x8x9xbf16> to vector<64x9xbf16>
    %c0_3 = arith.constant 0 : index
    %c0_4 = arith.constant 0 : index
    %3 = vector.load %arg3[%c0_3, %c0_4] : memref<9x16xbf16, #tpu.memory_space<vmem>>, vector<9x16xbf16>
    %c0_5 = arith.constant 0 : index
    %c0_6 = arith.constant 0 : index
    %4 = vector.load %arg4[%c0_5, %c0_6] : memref<1x16xf32, #tpu.memory_space<vmem>>, vector<1x16xf32>
    %cst = arith.constant dense<0.000000e+00> : vector<64x16xf32>
    %5 = tpu.matmul %2, %3, %cst {dimension_numbers = #tpu.dot_dimension_numbers<[1], [0], [0], [1], [0, 0, 1, 1], [], []>} : vector<64x9xbf16>, vector<9x16xbf16>, vector<64x16xf32> -> vector<64x16xf32>
    %6 = vector.broadcast %4 : vector<1x16xf32> to vector<64x16xf32>
    %7 = arith.addf %5, %6 : vector<64x16xf32>
    %cst_7 = arith.constant 0.000000e+00 : f32
    %8 = vector.broadcast %cst_7 : f32 to vector<64x16xf32>
    %9 = arith.maximumf %7, %8 : vector<64x16xf32>
    %10 = arith.truncf %9 : vector<64x16xf32> to vector<64x16xbf16>
    %c0_8 = arith.constant 0 : index
    %c0_9 = arith.constant 0 : index
    %11 = vector.load %arg5[%c0_8, %c0_9] : memref<16x128xbf16, #tpu.memory_space<vmem>>, vector<16x128xbf16>
    %c0_10 = arith.constant 0 : index
    %c0_11 = arith.constant 0 : index
    %12 = vector.load %arg6[%c0_10, %c0_11] : memref<1x128xf32, #tpu.memory_space<vmem>>, vector<1x128xf32>
    %cst_12 = arith.constant dense<0.000000e+00> : vector<64x128xf32>
    %13 = tpu.matmul %10, %11, %cst_12 {dimension_numbers = #tpu.dot_dimension_numbers<[1], [0], [0], [1], [0, 0, 1, 1], [], []>} : vector<64x16xbf16>, vector<16x128xbf16>, vector<64x128xf32> -> vector<64x128xf32>
    %14 = vector.broadcast %12 : vector<1x128xf32> to vector<64x128xf32>
    %15 = arith.addf %13, %14 : vector<64x128xf32>
    %cst_13 = arith.constant 0.000000e+00 : f32
    %16 = vector.broadcast %cst_13 : f32 to vector<64x128xf32>
    %17 = arith.maximumf %15, %16 : vector<64x128xf32>
    %18 = vector.shape_cast %17 : vector<64x128xf32> to vector<8x8x128xf32>
    %cst_14 = arith.constant dense<0xFF800000> : vector<8x128xf32>
    %19 = vector.multi_reduction <maximumf>, %18, %cst_14 [1] : vector<8x8x128xf32> to vector<8x128xf32>
    %c0_15 = arith.constant 0 : index
    %c0_16 = arith.constant 0 : index
    %c0_17 = arith.constant 0 : index
    %20 = vector.load %arg7[%c0_15, %c0_16, %c0_17] : memref<1x8x128xf32, #tpu.memory_space<vmem>>, vector<1x8x128xf32>
    %21 = vector.shape_cast %20 : vector<1x8x128xf32> to vector<8x128xf32>
    %22 = vector.shape_cast %19 : vector<8x128xf32> to vector<1x8x128xf32>
    tpu.vector_store %arg7[%c0_15, %c0_16, %c0_17], %22 {strides = array<i32>} : memref<1x8x128xf32, #tpu.memory_space<vmem>>, vector<1x8x128xf32>,
    return
  }
  func.func @transform_0(%arg0: i32, %arg1: i32) -> (i32, i32, i32, i32) {
    %c0_i32 = arith.constant 0 : i32
    %c0_i32_0 = arith.constant 0 : i32
    %c0_i32_1 = arith.constant 0 : i32
    return %arg0, %arg1, %c0_i32, %c0_i32_0 : i32, i32, i32, i32
  }
  func.func @transform_1(%arg0: i32, %arg1: i32) -> (i32, i32) {
    %c0_i32 = arith.constant 0 : i32
    %c0_i32_0 = arith.constant 0 : i32
    %c0_i32_1 = arith.constant 0 : i32
    return %c0_i32, %c0_i32_0 : i32, i32
  }
  func.func @transform_2(%arg0: i32, %arg1: i32) -> (i32, i32) {
    %c0_i32 = arith.constant 0 : i32
    %c0_i32_0 = arith.constant 0 : i32
    %c0_i32_1 = arith.constant 0 : i32
    return %c0_i32, %c0_i32_0 : i32, i32
  }
  func.func @transform_3(%arg0: i32, %arg1: i32) -> (i32, i32) {
    %c0_i32 = arith.constant 0 : i32
    %c0_i32_0 = arith.constant 0 : i32
    %c0_i32_1 = arith.constant 0 : i32
    return %c0_i32, %c0_i32_0 : i32, i32
  }
  func.func @transform_4(%arg0: i32, %arg1: i32) -> (i32, i32) {
    %c0_i32 = arith.constant 0 : i32
    %c0_i32_0 = arith.constant 0 : i32
    %c0_i32_1 = arith.constant 0 : i32
    return %c0_i32, %c0_i32_0 : i32, i32
  }
  func.func @transform_5(%arg0: i32, %arg1: i32) -> (i32, i32, i32) {
    %c0_i32 = arith.constant 0 : i32
    %c0_i32_0 = arith.constant 0 : i32
    return %arg0, %arg1, %c0_i32 : i32, i32, i32
  }
}

</mosaic_0001>

<llo_original>
// kernel: tpu_custom_call.1
$region0: #{tpu_custom_call.1}
  #allocation0 [shape = 'u32[]', space=smem, size = 0x4, offset = 0x4, fixed_abs, tag = 'smem constant byte address 0x4 - core index']
  #allocation1 [shape = 'u32[72,128]{1,0:T(1,128)}', space=vmem, size = 0x9000, scoped, tag = 'internal scratch']
  %s0 = inlined_call_operand.hbm [shape: bf16[2,8,8,9], index: 0, kind: input, shape index: {}]
  %s1 = inlined_call_operand.hbm [shape: bf16[9,16], index: 1, kind: input, shape index: {}]
  %s2 = inlined_call_operand.vmem [shape: f32[1,16], index: 2, kind: input, shape index: {}]
  %s3 = inlined_call_operand.hbm [shape: bf16[16,128], index: 3, kind: input, shape index: {}]
  %s4 = inlined_call_operand.vmem [shape: f32[1,128], index: 4, kind: input, shape index: {}]
  %s5 = inlined_call_operand.hbm [shape: f32[2,8,128], index: 5, kind: output, shape index: {}]
  %s6 = sld [smem:[#allocation0]]
  $region65: #{tpu_custom_call.1} parent=0
    _
  %s8 = ssub.s32 1, %s6
  %s9 = scalar_select 0, %s8, %s6
  $region1: #{tpu_custom_call.1} parent=0
    #allocation2 [shape = 'u8[32768]{0}', space=vmem, size = 0x8000, scoped, tag = 'input window, operand 0']
    #allocation3 [shape = 's32[2]{0}', space=sflag, size = 0x8, scoped, tag = 'scoped memory for tpu_custom_call.1']
    #allocation4 [shape = 's32[2]{0}', space=sflag, size = 0x8, scoped, tag = 'scoped memory for tpu_custom_call.1']
    #allocation5 [shape = 'u8[4096]{0}', space=vmem, size = 0x1000, scoped, tag = 'input window, operand 1, single buffered']
    #allocation6 [shape = 's32[1]{0}', space=sflag, size = 0x4, scoped, tag = 'scoped memory for tpu_custom_call.1']
    #allocation7 [shape = 'u8[4096]{0}', space=vmem, size = 0x1000, scoped, tag = 'input window, operand 3, single buffered']
    #allocation8 [shape = 'u8[8192]{0}', space=vmem, size = 0x2000, scoped, tag = 'output window, operand 0']
    %10 = vsyncpa [#allocation3], 0
    %s11 = scalar_lea.sflag [#allocation3], 1
    %12 = vsyncpa %s11, 0
    %13 = vsyncpa [#allocation6], 0
    %14 = vsyncpa [#allocation4], 0
    %s15 = scalar_lea.sflag [#allocation4], 1
    %16 = vsyncpa %s15, 0
    loop: start=0, step=1, limit=4
    $region2: #{tpu_custom_call.1} parent=1 // loop_pre_header
      _
    $region3: #{tpu_custom_call.1} parent=1 // loop_header
      %s18 = sphi 0, %s22
      %p19 = scmp.ge.s32.totalorder %s18, 4
      %s25 = sphi 0, %s37
      %s26 = sphi 0, %s33
      %s27 = sphi 0, %s25
      %s28 = sphi 0, %s26
      %s29 = sphi 0, %s27
      %s30 = sphi 0, %s28
      %s42 = sphi 0, %s44
      %s45 = sphi 0, %s42
      %s46 = sphi 0, %s45
      %s62 = sphi 0, %s46
      %s66 = sphi 0, %s66
      %s68 = sphi 0, %s66
      %s69 = sphi 0, %s68
      %s83 = sphi 0, %s69
      %s87 = sphi 0, %s87
      %s89 = sphi 0, %s87
      %s90 = sphi 0, %s89
      %s104 = sphi 0, %s90
      %s108 = sphi 0, %s108
      %s110 = sphi 0, %s108
      %s111 = sphi 0, %s110
      %s125 = sphi 0, %s111
      %s129 = sphi 0, %s129
      %s131 = sphi 0, %s129
      %s132 = sphi 0, %s131
      %s146 = sphi 0, %s132
      %s154 = sphi 0, %s156
      %s157 = sphi 0, %s154
      %s158 = sphi 0, %s157
      %s174 = sphi 0, %s158
    $region4: #{tpu_custom_call.1} parent=1 // loop_header_branch
      %21 = sbr.rel (%p19) target = $region8
    $region5: #{tpu_custom_call.1} parent=1 // loop_body
      %s23 = ssub.s32 %s18, 1
      %s24 = ssub.s32 %s18, 2
      %s31 = sadd.s32 1, %s26
      %p32 = scmp.ge.s32.totalorder %s31, 1
      %s33 = scalar_select %p32, 0, %s31
      %s34 = sadd.s32 1, %s25
      %s35 = scalar_select %p32, %s34, %s25
      %p36 = scmp.ge.s32.totalorder %s35, 2
      %s37 = scalar_select %p36, 0, %s35
      %s38 = ssub.s32 %s25, %s37
      %s39 = ssub.s32 %s26, %s33
      %s40 = sor.u32 %s38, %s39
      %p41 = scmp.eq.s32.totalorder %s40, 0
      %s43 = sadd.s32 %s42, 1
      %s44 = scalar_select %p41, %s42, %s43
      %p47 = pneg %p41
      %p48 = scmp.eq.s32.totalorder %s18, 1
      %p49 = por %p47, %p48
      %p50 = scmp.ne.s32.totalorder %s42, %s45
      %p51 = scmp.eq.s32.totalorder %s18, 0
      %p52 = por %p50, %p51
      %p53 = scmp.ne.s32.totalorder %s42, %s45
      %p54 = scmp.eq.s32.totalorder %s23, 1
      %p55 = por %p53, %p54
      %p56 = scmp.ne.s32.totalorder %s45, %s46
      %p57 = scmp.eq.s32.totalorder %s23, 0
      %p58 = por %p56, %p57
      %p59 = scmp.ne.s32.totalorder %s45, %s46
      %p60 = scmp.eq.s32.totalorder %s24, 1
      %p61 = por %p59, %p60
      %p63 = scmp.ne.s32.totalorder %s46, %s62
      %p64 = scmp.eq.s32.totalorder %s24, 0
      %p65 = por %p63, %p64
      %s67 = sadd.s32 %s66, 1
      %p70 = scmp.eq.s32.totalorder %s18, 1
      %p71 = scmp.ne.s32.totalorder %s66, %s68
      %p72 = scmp.eq.s32.totalorder %s18, 0
      %p73 = por %p71, %p72
      %p74 = scmp.ne.s32.totalorder %s66, %s68
      %p75 = scmp.eq.s32.totalorder %s23, 1
      %p76 = por %p74, %p75
      %p77 = scmp.ne.s32.totalorder %s68, %s69
      %p78 = scmp.eq.s32.totalorder %s23, 0
      %p79 = por %p77, %p78
      %p80 = scmp.ne.s32.totalorder %s68, %s69
      %p81 = scmp.eq.s32.totalorder %s24, 1
      %p82 = por %p80, %p81
      %p84 = scmp.ne.s32.totalorder %s69, %s83
      %p85 = scmp.eq.s32.totalorder %s24, 0
      %p86 = por %p84, %p85
      %s88 = sadd.s32 %s87, 1
      %p91 = scmp.eq.s32.totalorder %s18, 1
      %p92 = scmp.ne.s32.totalorder %s87, %s89
      %p93 = scmp.eq.s32.totalorder %s18, 0
      %p94 = por %p92, %p93
      %p95 = scmp.ne.s32.totalorder %s87, %s89
      %p96 = scmp.eq.s32.totalorder %s23, 1
      %p97 = por %p95, %p96
      %p98 = scmp.ne.s32.totalorder %s89, %s90
      %p99 = scmp.eq.s32.totalorder %s23, 0
      %p100 = por %p98, %p99
      %p101 = scmp.ne.s32.totalorder %s89, %s90
      %p102 = scmp.eq.s32.totalorder %s24, 1
      %p103 = por %p101, %p102
      %p105 = scmp.ne.s32.totalorder %s90, %s104
      %p106 = scmp.eq.s32.totalorder %s24, 0
      %p107 = por %p105, %p106
      %s109 = sadd.s32 %s108, 1
      %p112 = scmp.eq.s32.totalorder %s18, 1
      %p113 = scmp.ne.s32.totalorder %s108, %s110
      %p114 = scmp.eq.s32.totalorder %s18, 0
      %p115 = por %p113, %p114
      %p116 = scmp.ne.s32.totalorder %s108, %s110
      %p117 = scmp.eq.s32.totalorder %s23, 1
      %p118 = por %p116, %p117
      %p119 = scmp.ne.s32.totalorder %s110, %s111
      %p120 = scmp.eq.s32.totalorder %s23, 0
      %p121 = por %p119, %p120
      %p122 = scmp.ne.s32.totalorder %s110, %s111
      %p123 = scmp.eq.s32.totalorder %s24, 1
      %p124 = por %p122, %p123
      %p126 = scmp.ne.s32.totalorder %s111, %s125
      %p127 = scmp.eq.s32.totalorder %s24, 0
      %p128 = por %p126, %p127
      %s130 = sadd.s32 %s129, 1
      %p133 = scmp.eq.s32.totalorder %s18, 1
      %p134 = scmp.ne.s32.totalorder %s129, %s131
      %p135 = scmp.eq.s32.totalorder %s18, 0
      %p136 = por %p134, %p135
      %p137 = scmp.ne.s32.totalorder %s129, %s131
      %p138 = scmp.eq.s32.totalorder %s23, 1
      %p139 = por %p137, %p138
      %p140 = scmp.ne.s32.totalorder %s131, %s132
      %p141 = scmp.eq.s32.totalorder %s23, 0
      %p142 = por %p140, %p141
      %p143 = scmp.ne.s32.totalorder %s131, %s132
      %p144 = scmp.eq.s32.totalorder %s24, 1
      %p145 = por %p143, %p144
      %p147 = scmp.ne.s32.totalorder %s132, %s146
      %p148 = scmp.eq.s32.totalorder %s24, 0
      %p149 = por %p147, %p148
      %s150 = ssub.s32 %s25, %s37
      %s151 = ssub.s32 %s26, %s33
      %s152 = sor.u32 %s150, %s151
      %p153 = scmp.eq.s32.totalorder %s152, 0
      %s155 = sadd.s32 %s154, 1
      %s156 = scalar_select %p153, %s154, %s155
      %p159 = pneg %p153
      %p160 = scmp.eq.s32.totalorder %s18, 1
      %p161 = por %p159, %p160
      %p162 = scmp.ne.s32.totalorder %s154, %s157
      %p163 = scmp.eq.s32.totalorder %s18, 0
      %p164 = por %p162, %p163
      %p165 = scmp.ne.s32.totalorder %s154, %s157
      %p166 = scmp.eq.s32.totalorder %s23, 1
      %p167 = por %p165, %p166
      %p168 = scmp.ne.s32.totalorder %s157, %s158
      %p169 = scmp.eq.s32.totalorder %s23, 0
      %p170 = por %p168, %p169
      %p171 = scmp.ne.s32.totalorder %s157, %s158
      %p172 = scmp.eq.s32.totalorder %s24, 1
      %p173 = por %p171, %p172
      %p175 = scmp.ne.s32.totalorder %s158, %s174
      %p176 = scmp.eq.s32.totalorder %s24, 0
      %p177 = por %p175, %p176
      %p178 = scmp.le.s32.totalorder 1, %s18
      %p179 = scmp.lt.s32.totalorder %s18, 3
      %p180 = pnand %p178, %p179
      %p181 = pneg %p180
      // Predicated region
      $region9: #{tpu_custom_call.1} parent=5 // pred_check
        _
      $region10: #{tpu_custom_call.1} parent=5 // pred_check_branch
        %183 = sbr.rel (%p180) target = $region12
      $region11: #{tpu_custom_call.1} parent=5 // pred_region
        %s184 = ssub.s32 %s18, 1
        // Predicated region
        $region13: #{tpu_custom_call.1} parent=11 // pred_check
          %p185 = pneg %p79
        $region14: #{tpu_custom_call.1} parent=11 // pred_check_branch
          %187 = sbr.rel (%p185) target = $region16
        $region15: #{tpu_custom_call.1} parent=11 // pred_region
          %189 = vsyncadd [#allocation6], 0
          %s190 = sshll.u32 %s1, 4
          %s191 = int_to_ptr.hbm [resolvable:$true] %s190
          %s192 = sshll.u32 [#allocation5], 4
          %s193 = int_to_ptr.vmem [resolvable:$true] %s192
          %198 = dma.hbm_to_vmem [thread:$0]  %s191, 128, %s193, [#allocation6], 64, 64, 4
        $region16: #{tpu_custom_call.1} parent=11 // pred_fallthru
          _
        // Predicated region
        $region17: #{tpu_custom_call.1} parent=11 // pred_check
          %p199 = pneg %p100
        $region18: #{tpu_custom_call.1} parent=11 // pred_check_branch
          %201 = sbr.rel (%p199) target = $region20
        $region19: #{tpu_custom_call.1} parent=11 // pred_region
          _
        $region20: #{tpu_custom_call.1} parent=11 // pred_fallthru
          _
        // Predicated region
        $region21: #{tpu_custom_call.1} parent=11 // pred_check
          %p202 = pneg %p121
        $region22: #{tpu_custom_call.1} parent=11 // pred_check_branch
          %204 = sbr.rel (%p202) target = $region24
        $region23: #{tpu_custom_call.1} parent=11 // pred_region
          %206 = vsyncadd [#allocation6], 0
          %s207 = sshll.u32 %s3, 4
          %s208 = int_to_ptr.hbm [resolvable:$true] %s207
          %s209 = sshll.u32 [#allocation7], 4
          %s210 = int_to_ptr.vmem [resolvable:$true] %s209
          %215 = dma.hbm_to_vmem [thread:$0]  %s208, 128, %s210, [#allocation6], 64, 64, 4
        $region24: #{tpu_custom_call.1} parent=11 // pred_fallthru
          _
        // Predicated region
        $region25: #{tpu_custom_call.1} parent=11 // pred_check
          %p216 = pneg %p142
        $region26: #{tpu_custom_call.1} parent=11 // pred_check_branch
          %218 = sbr.rel (%p216) target = $region28
        $region27: #{tpu_custom_call.1} parent=11 // pred_region
          _
        $region28: #{tpu_custom_call.1} parent=11 // pred_fallthru
          _
      $region12: #{tpu_custom_call.1} parent=5 // pred_fallthru
        _
      %p219 = scmp.lt.s32.totalorder %s18, 2
      // Predicated region
      $region29: #{tpu_custom_call.1} parent=5 // pred_check
        %p220 = pneg %p219
      $region30: #{tpu_custom_call.1} parent=5 // pred_check_branch
        %222 = sbr.rel (%p220) target = $region32
      $region31: #{tpu_custom_call.1} parent=5 // pred_region
        // Predicated region
        $region33: #{tpu_custom_call.1} parent=31 // pred_check
          %p223 = pneg %p52
        $region34: #{tpu_custom_call.1} parent=31 // pred_check_branch
          %225 = sbr.rel (%p223) target = $region36
        $region35: #{tpu_custom_call.1} parent=31 // pred_region
          %s226 = sand.u32 %s42, 1
          %s227 = scalar_lea.sflag [#allocation3], %s226
          %s228 = sand.u32 %s42, 1
          %s229 = smul.addr %s228, 32
          %s230 = scalar_lea.vmem [#allocation2], %s229
          %s231 = smul.u32 8, %s26
          %233 = vsyncadd %s227, 0
          %s234 = smul.addr %s25, 8
          %s235 = sadd.s32 %s231, %s234
          %s236 = smul.addr %s235, 4
          %s237 = scalar_lea.hbm %s0, %s236
          %s238 = sshll.u32 %s237, 4
          %s239 = int_to_ptr.hbm [resolvable:$true] %s238
          %s240 = sshll.u32 %s230, 4
          %s241 = int_to_ptr.vmem [resolvable:$true] %s240
          %246 = dma.hbm_to_vmem [thread:$0]  %s239, 512, %s241, %s227, 64, 64, 4
        $region36: #{tpu_custom_call.1} parent=31 // pred_fallthru
          _
      $region32: #{tpu_custom_call.1} parent=5 // pred_fallthru
        _
      %p247 = scmp.le.s32.totalorder 1, %s18
      %p248 = scmp.lt.s32.totalorder %s18, 3
      %p249 = pnand %p247, %p248
      %p250 = pneg %p249
      // Predicated region
      $region37: #{tpu_custom_call.1} parent=5 // pred_check
        _
      $region38: #{tpu_custom_call.1} parent=5 // pred_check_branch
        %252 = sbr.rel (%p249) target = $region40
      $region39: #{tpu_custom_call.1} parent=5 // pred_region
        %s253 = ssub.s32 %s18, 1
        %s254 = sand.u32 %s45, 1
        %s255 = scalar_lea.sflag [#allocation3], %s254
        %s256 = sand.u32 %s45, 1
        %s257 = smul.addr %s256, 32
        %s258 = scalar_lea.vmem [#allocation2], %s257
        // Predicated region
        $region41: #{tpu_custom_call.1} parent=39 // pred_check
          %p259 = pneg %p58
        $region42: #{tpu_custom_call.1} parent=39 // pred_check_branch
          %261 = sbr.rel (%p259) target = $region44
        $region43: #{tpu_custom_call.1} parent=39 // pred_region
          %263 = dma.done %s255, 512
        $region44: #{tpu_custom_call.1} parent=39 // pred_fallthru
          _
        // Predicated region
        $region45: #{tpu_custom_call.1} parent=39 // pred_check
          %p264 = pneg %p79
        $region46: #{tpu_custom_call.1} parent=39 // pred_check_branch
          %266 = sbr.rel (%p264) target = $region48
        $region47: #{tpu_custom_call.1} parent=39 // pred_region
          %268 = dma.done [#allocation6], 128
        $region48: #{tpu_custom_call.1} parent=39 // pred_fallthru
          _
        // Predicated region
        $region49: #{tpu_custom_call.1} parent=39 // pred_check
          %p269 = pneg %p121
        $region50: #{tpu_custom_call.1} parent=39 // pred_check_branch
          %271 = sbr.rel (%p269) target = $region52
        $region51: #{tpu_custom_call.1} parent=39 // pred_region
          %273 = dma.done [#allocation6], 128
        $region52: #{tpu_custom_call.1} parent=39 // pred_fallthru
          _
        %s274 = sand.u32 %s45, 1
        %s275 = scalar_lea.sflag [#allocation3], %s274
        %s276 = sand.u32 %s45, 1
        %s277 = smul.addr %s276, 32
        %s278 = scalar_lea.vmem [#allocation2], %s277
        %p279 = pneg %p58
        %p280 = pneg %p55
        %p281 = pneg %p79
        %p282 = pneg %p76
        %p283 = pneg %p100
        %p284 = pneg %p97
        %p285 = pneg %p121
        %p286 = pneg %p118
        %p287 = pneg %p142
        %p288 = pneg %p139
        %p289 = pneg %p170
        %p290 = pneg %p167
        %s291 = sand.u32 %s157, 1
        %s292 = scalar_lea.sflag [#allocation4], %s291
        %s293 = sand.u32 %s157, 1
        %s294 = smul.addr %s293, 8
        %s295 = scalar_lea.vmem [#allocation8], %s294
        %s296 = smul.u32 8, %s28
        %v298 = vld [vmem:[%s258] sm:$0xf]
        %v299 = vld [vmem:[%s258 + $0x4] sm:$0xf]
        %v300 = vld [vmem:[%s258 + $0x8] sm:$0xf]
        %v301 = vld [vmem:[%s258 + $0xc] sm:$0xf]
        %v302 = vld [vmem:[%s258 + $0x10] sm:$0xf]
        %v303 = vld [vmem:[%s258 + $0x14] sm:$0xf]
        %v304 = vld [vmem:[%s258 + $0x18] sm:$0xf]
        %v305 = vld [vmem:[%s258 + $0x1c] sm:$0xf]
        %v306 = vld [vmem:[#allocation5] sm:$0xf]
        %v307 = vld [vmem:[#allocation5 + $0x4] sm:$0x1]
        %v308 = vld [vmem:[%s2] sm:$0x1]
        %v310 = vperm.slane %v308, 0
        %v320 = vunpack.c.l.b16 %v298
        %v321 = vunpack.c.l.b16 %v299
        %v322 = vunpack.c.l.b16 %v300
        %v323 = vunpack.c.l.b16 %v301
        %v324 = vunpack.c.l.b16 %v302
        %v325 = vunpack.c.l.b16 %v303
        %v326 = vunpack.c.l.b16 %v304
        %v327 = vunpack.c.l.b16 %v305
        %v328 = vpack.c.b16 %v321, %v320
        %v329 = vpack.c.b16 %v323, %v322
        %v330 = vpack.c.b16 %v325, %v324
        %v331 = vpack.c.b16 %v327, %v326
        %v334 = vunpack.c.l.b16 %v306
        %v335 = vunpack.c.l.b16 %v307
        %v336 = vpack.c.b16 %v335, %v334
        %vm337 = vcmask 72704
        %v339 = vsel %vm337, %v328, 0
        %v342 = vsel %vm337, %v329, 0
        %v345 = vsel %vm337, %v330, 0
        %v348 = vsel %vm337, %v331, 0
        %vm350 = vcmask 1043456
        %vm351 = vcmask 1044480
        %v352 = vsel %vm350, 4294967295, 65535
        %v353 = vsel %vm351, %v352, 0
        %v355 = vand.u32 %v336, %v353
        %357 = vmatpush.bf16.msra.mxu0 0
        %358 = vmatpush.bf16.msra.mxu0 0
        %359 = vmatpush.bf16.msra.mxu0 0
        %360 = vmatpush.bf16.msra.mxu0 0
        %361 = vmatpush.bf16.msra.mxu0 0
        %362 = vmatpush.bf16.msra.mxu0 0
        %363 = vmatpush.bf16.msra.mxu0 0
        %364 = vmatpush.bf16.msra.mxu0 %v355
        %365 = vmatmul.bf16.gmra.mxu0 %v339
        %v366 = vpop.f32.mrf.mxu0
        %v367 = vadd.f32 %v310, %v366
        %v368 = vpop.f32.mrf.mxu0
        %v369 = vadd.f32 %v310, %v368
        %370 = vmatmul.bf16.gmra.mxu0 %v342
        %v371 = vpop.f32.mrf.mxu0
        %v372 = vadd.f32 %v310, %v371
        %v373 = vpop.f32.mrf.mxu0
        %v374 = vadd.f32 %v310, %v373
        %375 = vmatmul.bf16.gmra.mxu0 %v345
        %v376 = vpop.f32.mrf.mxu0
        %v377 = vadd.f32 %v310, %v376
        %v378 = vpop.f32.mrf.mxu0
        %v379 = vadd.f32 %v310, %v378
        %380 = vmatmul.bf16.gmra.mxu0 %v348
        %v381 = vpop.f32.mrf.mxu0
        %v382 = vadd.f32 %v310, %v381
        %v383 = vpop.f32.mrf.mxu0
        %v384 = vadd.f32 %v310, %v383
        %385 = vdwg.mxu0
        %v386 = vmax.f32 %v367, 0.0
        %v387 = vmax.f32 %v369, 0.0
        %v388 = vmax.f32 %v372, 0.0
        %v389 = vmax.f32 %v374, 0.0
        %v390 = vmax.f32 %v377, 0.0
        %v391 = vmax.f32 %v379, 0.0
        %v392 = vmax.f32 %v382, 0.0
        %v393 = vmax.f32 %v384, 0.0
        %v394 = vpack.c.bf16 %v387, %v386
        %v395 = vpack.c.bf16 %v389, %v388
        %v396 = vpack.c.bf16 %v391, %v390
        %v397 = vpack.c.bf16 %v393, %v392
        %v398 = vld [vmem:[#allocation7] sm:$0xf]
        %v399 = vld [vmem:[#allocation7 + $0x4] sm:$0xf]
        %v400 = vld [vmem:[%s4] sm:$0x1]
        %v402 = vperm.slane %v400, 0
        %v406 = vunpack.c.l.b16 %v398
        %v407 = vunpack.c.l.b16 %v399
        %v408 = vpack.c.b16 %v407, %v406
        %vm410 = vcmask 130048
        %v412 = vsel %vm410, %v394, 0
        %v415 = vsel %vm410, %v395, 0
        %v418 = vsel %vm410, %v396, 0
        %v421 = vsel %vm410, %v397, 0
        %423 = vmatpush.bf16.msra.mxu0 0
        %424 = vmatpush.bf16.msra.mxu0 0
        %425 = vmatpush.bf16.msra.mxu0 0
        %426 = vmatpush.bf16.msra.mxu0 0
        %427 = vmatpush.bf16.msra.mxu0 0
        %428 = vmatpush.bf16.msra.mxu0 0
        %429 = vmatpush.bf16.msra.mxu0 0
        %430 = vmatpush.bf16.msra.mxu0 %v408
        %431 = vmatmul.bf16.gmra.mxu0 %v412
        %v432 = vpop.f32.mrf.mxu0
        %v433 = vadd.f32 %v402, %v432
        %v434 = vpop.f32.mrf.mxu0
        %v435 = vadd.f32 %v402, %v434
        %436 = vmatmul.bf16.gmra.mxu0 %v415
        %v437 = vpop.f32.mrf.mxu0
        %v438 = vadd.f32 %v402, %v437
        %v439 = vpop.f32.mrf.mxu0
        %v440 = vadd.f32 %v402, %v439
        %441 = vmatmul.bf16.gmra.mxu0 %v418
        %v442 = vpop.f32.mrf.mxu0
        %v443 = vadd.f32 %v402, %v442
        %v444 = vpop.f32.mrf.mxu0
        %v445 = vadd.f32 %v402, %v444
        %446 = vmatmul.bf16.gmra.mxu0 %v421
        %v447 = vpop.f32.mrf.mxu0
        %v448 = vadd.f32 %v402, %v447
        %v449 = vpop.f32.mrf.mxu0
        %v450 = vadd.f32 %v402, %v449
        %451 = vdwg.mxu0
        %v452 = vmax.f32 %v433, 0.0
        %v453 = vmax.f32 %v435, 0.0
        %v454 = vmax.f32 %v438, 0.0
        %v455 = vmax.f32 %v440, 0.0
        %v456 = vmax.f32 %v443, 0.0
        %v457 = vmax.f32 %v445, 0.0
        %v458 = vmax.f32 %v448, 0.0
        %v459 = vmax.f32 %v450, 0.0
        %v460 = vrot.slane %v452, 4
        %v461 = vmax.f32 %v452, %v460
        %v462 = vrot.slane %v461, 2
        %v463 = vmax.f32 %v461, %v462
        %v464 = vrot.slane %v463, 1
        %v465 = vmax.f32 %v463, %v464
        %v466 = vrot.slane %v453, 4
        %v467 = vmax.f32 %v453, %v466
        %v468 = vrot.slane %v467, 2
        %v469 = vmax.f32 %v467, %v468
        %v470 = vrot.slane %v469, 1
        %v471 = vmax.f32 %v469, %v470
        %v472 = vrot.slane %v454, 4
        %v473 = vmax.f32 %v454, %v472
        %v474 = vrot.slane %v473, 2
        %v475 = vmax.f32 %v473, %v474
        %v476 = vrot.slane %v475, 1
        %v477 = vmax.f32 %v475, %v476
        %v478 = vrot.slane %v455, 4
        %v479 = vmax.f32 %v455, %v478
        %v480 = vrot.slane %v479, 2
        %v481 = vmax.f32 %v479, %v480
        %v482 = vrot.slane %v481, 1
        %v483 = vmax.f32 %v481, %v482
        %v484 = vrot.slane %v456, 4
        %v485 = vmax.f32 %v456, %v484
        %v486 = vrot.slane %v485, 2
        %v487 = vmax.f32 %v485, %v486
        %v488 = vrot.slane %v487, 1
        %v489 = vmax.f32 %v487, %v488
        %v490 = vrot.slane %v457, 4
        %v491 = vmax.f32 %v457, %v490
        %v492 = vrot.slane %v491, 2
        %v493 = vmax.f32 %v491, %v492
        %v494 = vrot.slane %v493, 1
        %v495 = vmax.f32 %v493, %v494
        %v496 = vrot.slane %v458, 4
        %v497 = vmax.f32 %v458, %v496
        %v498 = vrot.slane %v497, 2
        %v499 = vmax.f32 %v497, %v498
        %v500 = vrot.slane %v499, 1
        %v501 = vmax.f32 %v499, %v500
        %v502 = vrot.slane %v459, 4
        %v503 = vmax.f32 %v459, %v502
        %v504 = vrot.slane %v503, 2
        %v505 = vmax.f32 %v503, %v504
        %v506 = vrot.slane %v505, 1
        %v507 = vmax.f32 %v505, %v506
        %vm516 = vcmask 1041409
        %v517 = vsel %vm516, %v471, %v465
        %vm518 = vcmask 1042434
        %v519 = vsel %vm518, %v477, %v517
        %vm520 = vcmask 1043459
        %v521 = vsel %vm520, %v483, %v519
        %vm522 = vcmask 1044484
        %v523 = vsel %vm522, %v489, %v521
        %vm524 = vcmask 1045509
        %v525 = vsel %vm524, %v495, %v523
        %vm526 = vcmask 1046534
        %v527 = vsel %vm526, %v501, %v525
        %vm528 = vcmask 1047559
        %v529 = vsel %vm528, %v507, %v527
        %531 = vst [vmem:[%s295] sm:$0xff] %v529
        %s532 = sand.u32 %s157, 1
        %s533 = scalar_lea.sflag [#allocation4], %s532
        %s534 = sand.u32 %s157, 1
        %s535 = smul.addr %s534, 8
        %s536 = scalar_lea.vmem [#allocation8], %s535
        // Predicated region
        $region53: #{tpu_custom_call.1} parent=39 // pred_check
          %p537 = pneg %p167
        $region54: #{tpu_custom_call.1} parent=39 // pred_check_branch
          %539 = sbr.rel (%p537) target = $region56
        $region55: #{tpu_custom_call.1} parent=39 // pred_region
          %541 = vsyncadd %s533, 0
          %s542 = sadd.s32 %s28, %s27
          %s543 = smul.addr %s542, 8
          %s544 = scalar_lea.hbm %s5, %s543
          %s546 = sshll.u32 %s536, 4
          %s547 = int_to_ptr.vmem [resolvable:$true] %s546
          %s548 = sshll.u32 %s544, 4
          %s549 = int_to_ptr.hbm [resolvable:$true] %s548
          %551 = dma.vmem_to_hbm [thread:$0]  %s547, 128, %s549, %s533
        $region56: #{tpu_custom_call.1} parent=39 // pred_fallthru
          _
      $region40: #{tpu_custom_call.1} parent=5 // pred_fallthru
        _
      %p552 = scmp.le.s32.totalorder 2, %s18
      // Predicated region
      $region57: #{tpu_custom_call.1} parent=5 // pred_check
        %p553 = pneg %p552
      $region58: #{tpu_custom_call.1} parent=5 // pred_check_branch
        %555 = sbr.rel (%p553) target = $region60
      $region59: #{tpu_custom_call.1} parent=5 // pred_region
        %s556 = ssub.s32 %s18, 2
        // Predicated region
        $region61: #{tpu_custom_call.1} parent=59 // pred_check
          %p557 = pneg %p173
        $region62: #{tpu_custom_call.1} parent=59 // pred_check_branch
          %559 = sbr.rel (%p557) target = $region64
        $region63: #{tpu_custom_call.1} parent=59 // pred_region
          %s560 = sand.u32 %s158, 1
          %s561 = scalar_lea.sflag [#allocation4], %s560
          %s562 = sand.u32 %s158, 1
          %s563 = smul.addr %s562, 8
          %s564 = scalar_lea.vmem [#allocation8], %s563
          %566 = dma.done %s561, 128
        $region64: #{tpu_custom_call.1} parent=59 // pred_fallthru
          _
      $region60: #{tpu_custom_call.1} parent=5 // pred_fallthru
        _
    $region6: #{tpu_custom_call.1} parent=1 // loop_footer
      %s22 = sadd.s32 1, %s18
    $region7: #{tpu_custom_call.1} parent=1 // loop_footer_branch
      %17 = sbr.rel target = $region3
    $region8: #{tpu_custom_call.1} parent=1 // loop_exit
      _
    %567 = vsyncpa [#allocation3], 1
    %s568 = scalar_lea.sflag [#allocation3], 1
    %569 = vsyncpa %s568, 1
    %570 = vsyncpa [#allocation6], 1
    %571 = vsyncpa [#allocation4], 1
    %s572 = scalar_lea.sflag [#allocation4], 1
    %573 = vsyncpa %s572, 1

</llo_original>
